<compile_context>
chip_gen: v7x
topology: tpu7x:2x2x1
jax: 0.10.0
libtpu: 0.0.40
codegen_flags: <defaults>
</compile_context>

<pallas_src>
import re
import numpy as np
import jax
import jax.numpy as jnp
from jax.experimental import pallas as pl
from jax.experimental.pallas import tpu as pltpu

NUM_CLASSES = 21          # 20 amino acids + 1 (hard-coded 21 in torch embed())
LANE = 128
SUBLANE = 8


def _round_up(x, m):
    return ((x + m - 1) // m) * m


def _tpu_generation():
    """Best-effort TPU generation (5, 6, 7, ...) from device_kind; None if unknown."""
    try:
        kind = jax.devices()[0].device_kind.lower()
        m = re.search(r"v(\d+)", kind)
        if m:
            return int(m.group(1))
    except Exception:
        pass
    return None


def pick_mxu_onehot_dtype(generation=None):
    """Narrowest MXU-native dtype representing 0/1 exactly, per chip generation.
    v5e/v6e MXUs take int8 natively; v7x has no integer MXU path -> fp8."""
    gen = _tpu_generation() if generation is None else generation
    if gen is None:
        return jnp.bfloat16
    if gen >= 7:
        return jnp.float8_e4m3fn
    return jnp.int8


def _vmem_block_bytes(shape, dtype):
    """VMEM footprint of one block, accounting for (8*pack, 128) tile padding."""
    itemsize = jnp.dtype(dtype).itemsize
    pack = max(1, 4 // itemsize)                      # f32:1, bf16:2, i8/fp8:4
    rows = _round_up(shape[-2], SUBLANE * pack)
    lanes = _round_up(shape[-1], LANE)
    lead = 1
    for d in shape[:-2]:
        lead *= d
    return lead * rows * lanes * itemsize


def _one_hot_kernel(idx_ref, out_ref):
    # idx_ref : (B_pad, TILE_L)          int8   -- residue indices, seq axis on lanes
    # out_ref : (21, B_pad, TILE_L)   out dtype -- batch on sublanes (dense, B_pad%8==0),
    #                                              seq lane-dense last dim (unmasked vst)
    idx = idx_ref[...].astype(jnp.int32)                            # widen int8 -> int32 in-kernel
    cls = jax.lax.broadcasted_iota(jnp.int32, out_ref.shape, 0)     # class id along axis 0
    out_ref[...] = (idx[None, :, :] == cls).astype(out_ref.dtype)


def one_hot_embed(padded_idx, *, tile_l=512, dtype=jnp.bfloat16,
                  vmem_limit_bytes=32 << 20, min_grid_steps=1):
    """padded_idx: [B_pad, Lp] int8, B_pad % 8 == 0, Lp % 128 == 0, values in [0, 21).
    Returns the lane-dense one-hot [21, B_pad, Lp] in `dtype` (0/1 exact)."""
    B_pad, Lp = padded_idx.shape
    assert padded_idx.dtype == jnp.int8, "indices must be int8 (values < 21)"
    assert B_pad % SUBLANE == 0, "pad batch to a multiple of 8 (sublane-dense)"
    assert Lp % LANE == 0, "pad sequence length to a multiple of 128 (lane-dense)"

    # Largest 128-multiple tile <= tile_l that divides Lp; prefer >= min_grid_steps
    # grid steps (v7x has 2 TensorCores -- a 1-step grid leaves one idle).
    cands = [t for t in range(LANE, min(tile_l, Lp) + 1, LANE) if Lp % t == 0]
    good = [t for t in cands if Lp // t >= min_grid_steps]
    tile = max(good) if good else max(cands)

    # Double-buffered (in + out) blocks must fit the scoped-VMEM budget we request.
    in_bytes = _vmem_block_bytes((B_pad, tile), padded_idx.dtype)
    out_bytes = _vmem_block_bytes((NUM_CLASSES, B_pad, tile), dtype)
    assert 2 * (in_bytes + out_bytes) <= vmem_limit_bytes - (4 << 20), \
        "tile too large for requested scoped VMEM; reduce tile_l / batch bucket"

    out_itemsize = jnp.dtype(dtype).itemsize
    cost = pl.CostEstimate(
        flops=B_pad * NUM_CLASSES * Lp,               # one compare per output element
        transcendentals=0,
        bytes_accessed=B_pad * Lp * 1 + NUM_CLASSES * B_pad * Lp * out_itemsize,
    )

    return pl.pallas_call(
        _one_hot_kernel,
        out_shape=jax.ShapeDtypeStruct((NUM_CLASSES, B_pad, Lp), dtype),
        grid_spec=pltpu.PrefetchScalarGridSpec(
            num_scalar_prefetch=0,
            grid=(Lp // tile,),
            in_specs=[pl.BlockSpec((B_pad, tile), lambda i: (0, i))],
            out_specs=pl.BlockSpec((NUM_CLASSES, B_pad, tile), lambda i: (0, 0, i)),
        ),
        compiler_params=pltpu.CompilerParams(
            dimension_semantics=("parallel",),        # v7x: split grid across 2 TCs
            vmem_limit_bytes=vmem_limit_bytes,
        ),
        cost_estimate=cost,
    )(padded_idx)


class BaseModelJAX:
    """JAX/Pallas port of openprotein BaseModel (abstract network head omitted)."""

    def __init__(self, embedding_size, tile_l=None, dtype=jnp.bfloat16,
                 vmem_limit_bytes=None):
        gen = _tpu_generation()
        self.embedding_size = embedding_size          # no learnable params in BaseModel
        self.dtype = dtype                            # bf16 default: 0/1 exact, half the HBM writes
        # v5e/v6e: 128 MiB VMEM -> bigger tiles, 64 MiB scoped budget.
        # v7x: 64 MiB VMEM, 2 TensorCores -> smaller tiles, >= 2 parallel grid steps.
        if tile_l is None:
            tile_l = 1024 if (gen is not None and gen <= 6) else 512
        if vmem_limit_bytes is None:
            vmem_limit_bytes = (64 << 20) if (gen is not None and gen <= 6) else (32 << 20)
        self.tile_l = tile_l
        self.vmem_limit_bytes = vmem_limit_bytes
        self.min_grid_steps = 2 if (gen is not None and gen >= 7) else 1

    def get_embedding_size(self):
        return self.embedding_size

    def _pad_host(self, original_aa_string):
        lengths = np.array([len(s) for s in original_aa_string], dtype=np.int32)
        # torch pack_sequence(enforce_sorted=True) semantics: sorted descending.
        if np.any(np.diff(lengths) > 0):
            raise ValueError("sequences must be sorted by decreasing length")
        B = len(original_aa_string)
        max_len = int(lengths.max())
        B_pad = _round_up(max(B, SUBLANE), SUBLANE)   # batch bucket: dense sublanes, stable shapes
        Lp = _round_up(max_len, self.tile_l)          # length bucket: one compile per bucket
        padded = np.zeros((B_pad, Lp), dtype=np.int8)  # int8 indices: 4x less transfer / HBM read
        for b, s in enumerate(original_aa_string):
            padded[b, : len(s)] = np.asarray(s, dtype=np.int8)
        batch_sizes = (lengths[None, :] > np.arange(max_len)[:, None]).sum(
            axis=1).astype(np.int32)
        return padded, lengths, batch_sizes

    def embed_lane_dense(self, original_aa_string):
        """Production path: lane-dense one-hot [21, B_pad, Lp] straight from the
        kernel — no transpose ever materializes; fold the permutation into the
        consumer's dot_general/einsum.  Padded positions / padded batch rows are
        class-0 one-hots; mask with lengths/batch_sizes downstream."""
        padded, lengths, batch_sizes = self._pad_host(original_aa_string)
        dense = one_hot_embed(jnp.asarray(padded), tile_l=self.tile_l,
                              dtype=self.dtype,
                              vmem_limit_bytes=self.vmem_limit_bytes,
                              min_grid_steps=self.min_grid_steps)
        return dense, lengths, batch_sizes

    def embed(self, original_aa_string):
        """Torch-layout path: [L, B, 21] == scatter_(1, idx, 1).transpose(1, 2).
        Bucket/batch padding is sliced off BEFORE the transpose so only up to
        round_up(max_len, 128) columns are permuted."""
        dense, lengths, batch_sizes = self.embed_lane_dense(original_aa_string)
        B = int(lengths.shape[0])
        max_len = int(lengths.max())
        L128 = _round_up(max_len, LANE)
        oh = dense[:, :B, :L128]                          # drop padding first (cheap slice)
        one_hot = jnp.transpose(oh, (2, 1, 0))[:max_len]  # [L, B, 21]
        return one_hot, lengths, batch_sizes

    def forward(self, original_aa_string):
        # TODO(synk): _get_network_emissions is abstract in BaseModel (defined by
        # subclasses), so forward has no concrete compute to lower here.
        return self._get_network_emissions(original_aa_string)

    def _get_network_emissions(self, original_aa_string):
        raise NotImplementedError("abstract in BaseModel; subclasses implement it")


if __name__ == "__main__":
    key = jax.random.PRNGKey(0)
    k1, k2, k3, k4 = jax.random.split(key, 4)

    def reference(seqs):
        lens = [len(s) for s in seqs]
        L = max(lens)
        pad = np.zeros((L, len(seqs)), dtype=np.int32)
        for b, s in enumerate(seqs):
            pad[: len(s), b] = s
        return np.asarray(jax.nn.one_hot(jnp.asarray(pad), NUM_CLASSES, dtype=jnp.float32))

    # --- 1) default bf16 output, tiny sequences (single grid step) --------------
    seq_a = np.asarray(jax.random.randint(k1, (12,), 0, NUM_CLASSES), dtype=np.int32)
    seq_b = np.asarray(jax.random.randint(k2, (8,), 0, NUM_CLASSES), dtype=np.int32)

    model = BaseModelJAX(embedding_size=NUM_CLASSES, tile_l=128)   # small tile for tiny bucket
    one_hot, lengths, batch_sizes = model.embed([seq_a, seq_b])
    one_hot = jax.block_until_ready(one_hot)
    ref = reference([seq_a, seq_b])
    assert one_hot.shape == (12, 2, NUM_CLASSES)
    np.testing.assert_array_equal(np.asarray(one_hot).astype(np.float32), ref)
    assert int(batch_sizes[0]) == 2 and int(batch_sizes[-1]) == 1

    # Lane-dense production layout (no transpose) agrees with the reference too.
    dense, _, _ = model.embed_lane_dense([seq_a, seq_b])
    dense = jax.block_until_ready(dense)
    dense_np = np.transpose(np.asarray(dense)[:, :2, :12].astype(np.float32), (2, 1, 0))
    np.testing.assert_array_equal(dense_np, ref)

    # --- 2) f32 output, longer sequences (multi-step grid, 2 x 128 tiles) -------
    seq_c = np.asarray(jax.random.randint(k3, (200,), 0, NUM_CLASSES), dtype=np.int32)
    seq_d = np.asarray(jax.random.randint(k4, (150,), 0, NUM_CLASSES), dtype=np.int32)
    model32 = BaseModelJAX(embedding_size=NUM_CLASSES, tile_l=128, dtype=jnp.float32)
    oh32, lens32, bs32 = model32.embed([seq_c, seq_d])
    oh32 = jax.block_until_ready(oh32)
    ref2 = reference([seq_c, seq_d])
    assert oh32.shape == (200, 2, NUM_CLASSES)
    np.testing.assert_array_equal(np.asarray(oh32), ref2)
    assert int(bs32[0]) == 2 and int(bs32[-1]) == 1

    print("KERNEL_OK")
</pallas_src>

<mosaic_0001>
module attributes {stable_mosaic.version = 11 : i64} {
  func.func @_one_hot_kernel(%arg0: i32, %arg1: memref<8x128xi8, #tpu.memory_space<vmem>>, %arg2: memref<21x8x128xbf16, #tpu.memory_space<vmem>>) attributes {dimension_semantics = [#tpu.dimension_semantics<parallel>], iteration_bounds = array<i64: 1>, scalar_prefetch = 0 : i64, scratch_operands = 0 : i64, tpu.core_type = #tpu.core_type<tc>, window_params = [{transform_indices = @transform_0, window_bounds = array<i64: 8, 128>}, {transform_indices = @transform_1, window_bounds = array<i64: 21, 8, 128>}]} {
    %c0 = arith.constant 0 : index
    %c0_0 = arith.constant 0 : index
    %0 = vector.load %arg1[%c0, %c0_0] : memref<8x128xi8, #tpu.memory_space<vmem>>, vector<8x128xi8>
    %1 = arith.extsi %0 : vector<8x128xi8> to vector<8x128xi32>
    %2 = tpu.iota {dimensions = array<i32: 0>} : vector<21x8x128xi32>
    %3 = vector.shape_cast %1 : vector<8x128xi32> to vector<1x8x128xi32>
    %4 = vector.broadcast %3 : vector<1x8x128xi32> to vector<21x8x128xi32>
    %5 = arith.cmpi eq, %4, %2 : vector<21x8x128xi32>
    %6 = arith.extui %5 : vector<21x8x128xi1> to vector<21x8x128xi32>
    %7 = arith.sitofp %6 : vector<21x8x128xi32> to vector<21x8x128xf32>
    %8 = arith.truncf %7 : vector<21x8x128xf32> to vector<21x8x128xbf16>
    %c0_1 = arith.constant 0 : index
    %c0_2 = arith.constant 0 : index
    %c0_3 = arith.constant 0 : index
    %9 = vector.load %arg2[%c0_1, %c0_2, %c0_3] : memref<21x8x128xbf16, #tpu.memory_space<vmem>>, vector<21x8x128xbf16>
    tpu.vector_store %arg2[%c0_1, %c0_2, %c0_3], %8 {strides = array<i32>} : memref<21x8x128xbf16, #tpu.memory_space<vmem>>, vector<21x8x128xbf16>,
    return
  }
  func.func @transform_0(%arg0: i32) -> (i32, i32) {
    %c0_i32 = arith.constant 0 : i32
    %c0_i32_0 = arith.constant 0 : i32
    return %c0_i32, %arg0 : i32, i32
  }
  func.func @transform_1(%arg0: i32) -> (i32, i32, i32) {
    %c0_i32 = arith.constant 0 : i32
    %c0_i32_0 = arith.constant 0 : i32
    %c0_i32_1 = arith.constant 0 : i32
    return %c0_i32, %c0_i32_0, %arg0 : i32, i32, i32
  }
}

</mosaic_0001>

<llo_original>
// kernel: tpu_custom_call.1
$region0: #{tpu_custom_call.1}
  #allocation0 [shape = 'u32[]', space=smem, size = 0x4, offset = 0x4, fixed_abs, tag = 'smem constant byte address 0x4 - core index']
  #allocation1 [shape = 'u32[144,128]{1,0:T(1,128)}', space=vmem, size = 0x12000, scoped, tag = 'internal scratch']
  %s0 = inlined_call_operand.hbm [shape: s8[8,128], index: 0, kind: input, shape index: {}]
  %s1 = inlined_call_operand.hbm [shape: bf16[21,8,128], index: 1, kind: output, shape index: {}]
  %s2 = sld [smem:[#allocation0]]
  $region18: #{tpu_custom_call.1} parent=0
    _
  %s4 = ssub.s32 1, %s2
  %s5 = scalar_select 0, %s4, %s2
  $region1: #{tpu_custom_call.1} parent=0
    #allocation2 [shape = 'u8[1024]{0}', space=vmem, size = 0x400, scoped, tag = 'input window, operand 0, single buffered']
    #allocation3 [shape = 's32[1]{0}', space=sflag, size = 0x4, scoped, tag = 'scoped memory for tpu_custom_call.1']
    #allocation4 [shape = 's32[1]{0}', space=sflag, size = 0x4, scoped, tag = 'scoped memory for tpu_custom_call.1']
    #allocation5 [shape = 'u8[43008]{0}', space=vmem, size = 0xa800, scoped, tag = 'output window, operand 0, single buffered']
    %6 = vsyncpa [#allocation3], 0
    %7 = vsyncpa [#allocation4], 0
    // Predicated region
    $region2: #{tpu_custom_call.1} parent=1 // pred_check
      _
    $region3: #{tpu_custom_call.1} parent=1 // pred_check_branch
      %9 = sbr.rel (0) target = $region5
    $region4: #{tpu_custom_call.1} parent=1 // pred_region
      %s11 = ssub.s32 32, 32
      %12 = vsyncadd [#allocation3], %s11
      %s14 = sshll.u32 [#allocation2], 4
      %s15 = int_to_ptr.vmem [resolvable:$true] %s14
      %17 = dma.hbm_to_vmem [thread:$0]  %s0, 32, %s15, [#allocation3]
    $region5: #{tpu_custom_call.1} parent=1 // pred_fallthru
      _
    // Predicated region
    $region6: #{tpu_custom_call.1} parent=1 // pred_check
      _
    $region7: #{tpu_custom_call.1} parent=1 // pred_check_branch
      %19 = sbr.rel (0) target = $region9
    $region8: #{tpu_custom_call.1} parent=1 // pred_region
      %20 = dma.done [#allocation3], 32
    $region9: #{tpu_custom_call.1} parent=1 // pred_fallthru
      _
    %v21 = vld [vmem:[#allocation2] sm:$0x3]
    %v22 = vunpack.c.0.s8 %v21
    %vm23 = vcmp.eq.s32.totalorder %v22, 0
    %vm24 = vcmp.eq.s32.totalorder %v22, 1
    %vm25 = vcmp.eq.s32.totalorder %v22, 2
    %vm26 = vcmp.eq.s32.totalorder %v22, 3
    %vm27 = vcmp.eq.s32.totalorder %v22, 4
    %vm28 = vcmp.eq.s32.totalorder %v22, 5
    %vm29 = vcmp.eq.s32.totalorder %v22, 6
    %vm30 = vcmp.eq.s32.totalorder %v22, 7
    %vm31 = vcmp.eq.s32.totalorder %v22, 8
    %vm32 = vcmp.eq.s32.totalorder %v22, 9
    %vm33 = vcmp.eq.s32.totalorder %v22, 10
    %vm34 = vcmp.eq.s32.totalorder %v22, 11
    %vm35 = vcmp.eq.s32.totalorder %v22, 12
    %vm36 = vcmp.eq.s32.totalorder %v22, 13
    %vm37 = vcmp.eq.s32.totalorder %v22, 14
    %vm38 = vcmp.eq.s32.totalorder %v22, 15
    %vm39 = vcmp.eq.s32.totalorder %v22, 16
    %vm40 = vcmp.eq.s32.totalorder %v22, 17
    %vm41 = vcmp.eq.s32.totalorder %v22, 18
    %vm42 = vcmp.eq.s32.totalorder %v22, 19
    %vm43 = vcmp.eq.s32.totalorder %v22, 20
    %v44 = vsel %vm23, 1, 0
    %v45 = vsel %vm24, 1, 0
    %v46 = vsel %vm25, 1, 0
    %v47 = vsel %vm26, 1, 0
    %v48 = vsel %vm27, 1, 0
    %v49 = vsel %vm28, 1, 0
    %v50 = vsel %vm29, 1, 0
    %v51 = vsel %vm30, 1, 0
    %v52 = vsel %vm31, 1, 0
    %v53 = vsel %vm32, 1, 0
    %v54 = vsel %vm33, 1, 0
    %v55 = vsel %vm34, 1, 0
    %v56 = vsel %vm35, 1, 0
    %v57 = vsel %vm36, 1, 0
    %v58 = vsel %vm37, 1, 0
    %v59 = vsel %vm38, 1, 0
    %v60 = vsel %vm39, 1, 0
    %v61 = vsel %vm40, 1, 0
    %v62 = vsel %vm41, 1, 0
    %v63 = vsel %vm42, 1, 0
    %v64 = vsel %vm43, 1, 0
    %v65 = vcvt.s32.f32 %v44
    %v66 = vcvt.s32.f32 %v45
    %v67 = vcvt.s32.f32 %v46
    %v68 = vcvt.s32.f32 %v47
    %v69 = vcvt.s32.f32 %v48
    %v70 = vcvt.s32.f32 %v49
    %v71 = vcvt.s32.f32 %v50
    %v72 = vcvt.s32.f32 %v51
    %v73 = vcvt.s32.f32 %v52
    %v74 = vcvt.s32.f32 %v53
    %v75 = vcvt.s32.f32 %v54
    %v76 = vcvt.s32.f32 %v55
    %v77 = vcvt.s32.f32 %v56
    %v78 = vcvt.s32.f32 %v57
    %v79 = vcvt.s32.f32 %v58
    %v80 = vcvt.s32.f32 %v59
    %v81 = vcvt.s32.f32 %v60
    %v82 = vcvt.s32.f32 %v61
    %v83 = vcvt.s32.f32 %v62
    %v84 = vcvt.s32.f32 %v63
    %v85 = vcvt.s32.f32 %v64
    %v86 = vpack.c.bf16 %v65, %v65
    %v87 = vpack.c.bf16 %v66, %v66
    %v88 = vpack.c.bf16 %v67, %v67
    %v89 = vpack.c.bf16 %v68, %v68
    %v90 = vpack.c.bf16 %v69, %v69
    %v91 = vpack.c.bf16 %v70, %v70
    %v92 = vpack.c.bf16 %v71, %v71
    %v93 = vpack.c.bf16 %v72, %v72
    %v94 = vpack.c.bf16 %v73, %v73
    %v95 = vpack.c.bf16 %v74, %v74
    %v96 = vpack.c.bf16 %v75, %v75
    %v97 = vpack.c.bf16 %v76, %v76
    %v98 = vpack.c.bf16 %v77, %v77
    %v99 = vpack.c.bf16 %v78, %v78
    %v100 = vpack.c.bf16 %v79, %v79
    %v101 = vpack.c.bf16 %v80, %v80
    %v102 = vpack.c.bf16 %v81, %v81
    %v103 = vpack.c.bf16 %v82, %v82
    %v104 = vpack.c.bf16 %v83, %v83
    %v105 = vpack.c.bf16 %v84, %v84
    %v106 = vpack.c.bf16 %v85, %v85
    %107 = vst [vmem:[#allocation5] sm:$0xf] %v86
    %108 = vst [vmem:[#allocation5 + $0x4] sm:$0xf] %v87
    %109 = vst [vmem:[#allocation5 + $0x8] sm:$0xf] %v88
    %110 = vst [vmem:[#allocation5 + $0xc] sm:$0xf] %v89
    %111 = vst [vmem:[#allocation5 + $0x10] sm:$0xf] %v90
    %112 = vst [vmem:[#allocation5 + $0x14] sm:$0xf] %v91
    %113 = vst [vmem:[#allocation5 + $0x18] sm:$0xf] %v92
    %114 = vst [vmem:[#allocation5 + $0x1c] sm:$0xf] %v93
    %115 = vst [vmem:[#allocation5 + $0x20] sm:$0xf] %v94
    %116 = vst [vmem:[#allocation5 + $0x24] sm:$0xf] %v95
    %117 = vst [vmem:[#allocation5 + $0x28] sm:$0xf] %v96
    %118 = vst [vmem:[#allocation5 + $0x2c] sm:$0xf] %v97
    %119 = vst [vmem:[#allocation5 + $0x30] sm:$0xf] %v98
    %120 = vst [vmem:[#allocation5 + $0x34] sm:$0xf] %v99
    %121 = vst [vmem:[#allocation5 + $0x38] sm:$0xf] %v100
    %122 = vst [vmem:[#allocation5 + $0x3c] sm:$0xf] %v101
    %123 = vst [vmem:[#allocation5 + $0x40] sm:$0xf] %v102
    %124 = vst [vmem:[#allocation5 + $0x44] sm:$0xf] %v103
    %125 = vst [vmem:[#allocation5 + $0x48] sm:$0xf] %v104
    %126 = vst [vmem:[#allocation5 + $0x4c] sm:$0xf] %v105
    %127 = vst [vmem:[#allocation5 + $0x50] sm:$0xf] %v106
    // Predicated region
    $region10: #{tpu_custom_call.1} parent=1 // pred_check
      _
    $region11: #{tpu_custom_call.1} parent=1 // pred_check_branch
      %129 = sbr.rel (0) target = $region13
    $region12: #{tpu_custom_call.1} parent=1 // pred_region
      %s131 = ssub.s32 1344, 1344
      %132 = vsyncadd [#allocation4], %s131
      %s133 = sshll.u32 [#allocation5], 4
      %s134 = int_to_ptr.vmem [resolvable:$true] %s133
      %139 = dma.vmem_to_hbm [thread:$0]  %s134, 1344, %s1, [#allocation4], 64, 64, 4
    $region13: #{tpu_custom_call.1} parent=1 // pred_fallthru
      _
    // Predicated region
    $region14: #{tpu_custom_call.1} parent=1 // pred_check
      _
    $region15: #{tpu_custom_call.1} parent=1 // pred_check_branch
      %141 = sbr.rel (0) target = $region17
    $region16: #{tpu_custom_call.1} parent=1 // pred_region
      %142 = dma.done [#allocation4], 1344
    $region17: #{tpu_custom_call.1} parent=1 // pred_fallthru
      _
    %143 = vsyncpa [#allocation3], 1
    %144 = vsyncpa [#allocation4], 1

</llo_original>
